<compile_context>
chip_gen: v6e
topology: v6e:2x2x1
jax: 0.10.0
libtpu: 0.0.40
codegen_flags: <defaults>
</compile_context>

<pallas_src>
import functools

import jax
import jax.numpy as jnp
from jax.experimental import pallas as pl
from jax.experimental.pallas import tpu as pltpu


# -----------------------------------------------------------------------------
# VMEM sizing — generation aware (v5e/v6e: 128 MiB per TC, v7x: 64 MiB per TC)
# -----------------------------------------------------------------------------
@functools.lru_cache(maxsize=None)
def _vmem_limit_bytes():
    cap = 64 * 1024 * 1024  # conservative fallback (v7x-sized)
    try:
        info = pltpu.get_tpu_info()
        cap = int(getattr(info, "vmem_capacity_bytes", cap) or cap)
    except Exception:
        pass
    # ~75% of physical, capped, with a sane floor — leaves Mosaic-internal headroom.
    return max(32 * 1024 * 1024, min(cap * 3 // 4, 96 * 1024 * 1024))


def _aligned_divisors(full, align):
    return [d for d in range(align, full + 1, align) if full % d == 0]


def _pick_tile(full, pref, align):
    """Largest `align`-aligned divisor of `full` that is <= pref; else the smallest
    aligned divisor; else `full` (block == full dim is always layout-legal)."""
    divs = _aligned_divisors(full, align)
    if not divs:
        return full
    under = [d for d in divs if d <= pref]
    return max(under) if under else min(divs)


# -----------------------------------------------------------------------------
# Tiled, pipelined linear:  y = (x @ W) [* out_scale] (+ b)
# -----------------------------------------------------------------------------
def _matmul_kernel(x_ref, w_ref, o_ref, acc_ref, *, out_scale=None):
    @pl.when(pl.program_id(2) == 0)
    def _init():
        acc_ref[...] = jnp.zeros_like(acc_ref)

    acc_ref[...] += jnp.dot(x_ref[...], w_ref[...], preferred_element_type=jnp.float32)

    @pl.when(pl.program_id(2) == pl.num_programs(2) - 1)
    def _done():
        acc = acc_ref[...]
        if out_scale is not None:          # trace-time constant fold (Q projection)
            acc = acc * out_scale
        o_ref[...] = acc.astype(o_ref.dtype)


def _matmul_bias_kernel(x_ref, w_ref, b_ref, o_ref, acc_ref):
    @pl.when(pl.program_id(2) == 0)
    def _init():
        acc_ref[...] = jnp.zeros_like(acc_ref)

    acc_ref[...] += jnp.dot(x_ref[...], w_ref[...], preferred_element_type=jnp.float32)

    @pl.when(pl.program_id(2) == pl.num_programs(2) - 1)
    def _done():
        o_ref[...] = (acc_ref[...] + b_ref[...].astype(jnp.float32)).astype(o_ref.dtype)


def linear(x, w, b=None, *, out_scale=None, tm=512, tn=512, tk=512):
    """x: (M, K), w: (K, Nout), b: (1, Nout) or None. out_scale folds a scalar into
    the epilogue (used for the softmax scale on the Q projection, b must be None)."""
    M, K = x.shape
    Kw, Nout = w.shape
    assert K == Kw
    assert b is None or out_scale is None

    itemsize = jnp.dtype(x.dtype).itemsize
    sub = max(8, 32 // itemsize)            # sublane count: 8 f32 / 16 bf16 / 32 int8
    tm = _pick_tile(M, tm, sub)
    tn = _pick_tile(Nout, tn, 128)          # lane-aligned; 512 default keeps 256-mult
    tk = _pick_tile(K, tk, 128)

    # Shrink tiles if the double-buffered blocks + f32 accumulator exceed budget.
    budget = _vmem_limit_bytes() // 2

    def _fits(a, bdim, c):
        return (2 * itemsize * (a * c + c * bdim + a * bdim) + 4 * a * bdim) <= budget

    for _ in range(8):
        if _fits(tm, tn, tk):
            break
        new = (_pick_tile(M, max(sub, tm // 2), sub),
               _pick_tile(Nout, max(128, tn // 2), 128),
               _pick_tile(K, max(128, tk // 2), 128))
        if new == (tm, tn, tk):
            break
        tm, tn, tk = new

    grid = (M // tm, Nout // tn, K // tk)
    x_spec = pl.BlockSpec((tm, tk), lambda i, j, k: (i, k))
    w_spec = pl.BlockSpec((tk, tn), lambda i, j, k: (k, j))
    o_spec = pl.BlockSpec((tm, tn), lambda i, j, k: (i, j))

    cost = pl.CostEstimate(
        flops=2 * M * K * Nout,
        transcendentals=0,
        bytes_accessed=itemsize * (M * K * (Nout // tn) + K * Nout * (M // tm)
                                   + M * Nout + (Nout if b is not None else 0)),
    )
    cparams = pltpu.CompilerParams(
        dimension_semantics=("parallel", "parallel", "arbitrary"),
        vmem_limit_bytes=_vmem_limit_bytes(),
    )
    out_shape = jax.ShapeDtypeStruct((M, Nout), x.dtype)
    scratch = [pltpu.VMEM((tm, tn), jnp.float32)]

    if b is None:
        return pl.pallas_call(
            functools.partial(_matmul_kernel, out_scale=out_scale),
            out_shape=out_shape,
            grid_spec=pltpu.PrefetchScalarGridSpec(
                num_scalar_prefetch=0,
                grid=grid,
                in_specs=[x_spec, w_spec],
                out_specs=o_spec,
                scratch_shapes=scratch,
            ),
            compiler_params=cparams,
            cost_estimate=cost,
        )(x, w)

    b_spec = pl.BlockSpec((1, tn), lambda i, j, k: (0, j))
    return pl.pallas_call(
        _matmul_bias_kernel,
        out_shape=out_shape,
        grid_spec=pltpu.PrefetchScalarGridSpec(
            num_scalar_prefetch=0,
            grid=grid,
            in_specs=[x_spec, w_spec, b_spec],
            out_specs=o_spec,
            scratch_shapes=scratch,
        ),
        compiler_params=cparams,
        cost_estimate=cost,
    )(x, w, b)


# -----------------------------------------------------------------------------
# Flash (online-softmax) multi-head attention on fused KV.
#   Q : (B, N, C)  (already multiplied by the softmax scale)
#   KV: (B, NK, 2C)  lanes [0, C) = K projection, lanes [C, 2C) = V projection
# Grid = (B, N//tq, NK//tkv); per-head running max / denom / accumulator live in
# VMEM scratch; the output tile is stored once, lane-dense, at the last KV step.
# -----------------------------------------------------------------------------
def _flash_attn_kernel(q_ref, kv_ref, o_ref, m_sc, l_sc, acc_sc, *,
                       num_heads, head_dim):
    ki = pl.program_id(2)
    C = num_heads * head_dim

    @pl.when(ki == 0)
    def _init():
        m_sc[...] = jnp.full_like(m_sc, -jnp.inf)
        l_sc[...] = jnp.zeros_like(l_sc)
        acc_sc[...] = jnp.zeros_like(acc_sc)

    q = q_ref[0]     # (tq, C)   scale already folded in at projection time
    kv = kv_ref[0]   # (tkv, 2C)

    # hd < 128 regime: in-kernel static lane slices; the MXU is underfed here by
    # construction, the binding work is VPU/exp — handled by post-PV normalization.
    for h in range(num_heads):
        qh = q[:, h * head_dim:(h + 1) * head_dim]                 # (tq, hd)
        kh = kv[:, h * head_dim:(h + 1) * head_dim]                # (tkv, hd)
        vh = kv[:, C + h * head_dim:C + (h + 1) * head_dim]        # (tkv, hd)

        # q @ k^T as a transposed contraction — no materialized K transpose.
        s = jax.lax.dot_general(qh, kh, (((1,), (1,)), ((), ())),
                                preferred_element_type=jnp.float32)  # (tq, tkv)

        m_prev = m_sc[h]                                           # (tq, 1)
        m_new = jnp.maximum(m_prev, jnp.max(s, axis=-1, keepdims=True))
        alpha = jnp.exp(m_prev - m_new)
        p = jnp.exp(s - m_new)
        l_sc[h] = alpha * l_sc[h] + jnp.sum(p, axis=-1, keepdims=True)
        pv = jax.lax.dot_general(p.astype(vh.dtype), vh, (((1,), (0,)), ((), ())),
                                 preferred_element_type=jnp.float32)  # (tq, hd)
        acc_sc[h] = alpha * acc_sc[h] + pv
        m_sc[h] = m_new

    @pl.when(ki == pl.num_programs(2) - 1)
    def _finalize():
        # Normalize POST-PV (O(tq*hd) work, exact reciprocal) and emit ONE
        # lane-dense (tq, C) store — no masked per-head partial stores.
        parts = []
        for h in range(num_heads):
            inv_l = 1.0 / l_sc[h]                                  # (tq, 1) exact
            parts.append(acc_sc[h] * inv_l)
        o_ref[0] = jnp.concatenate(parts, axis=-1).astype(o_ref.dtype)


def _divisor_tiles(full, align, pref):
    divs = _aligned_divisors(full, align)
    if not divs:
        return [full]
    under = [d for d in divs if d <= pref]
    return sorted(under if under else [min(divs)], reverse=True)


def _pick_attn_tiles(N, NK, C, num_heads, hd, itemsize, budget):
    tq_cands = _divisor_tiles(N, 8, 512)
    tkv_cands = _divisor_tiles(NK, 8, 1024)

    def footprint(tq, tkv):
        blocks = 2 * itemsize * (2 * tq * C + 2 * tkv * C)          # dbl-buffered Q,O,KV
        scratch = 4 * num_heads * tq * (2 * 128 + max(hd, 128))     # m,l,acc (lane-padded)
        temps = 16 * tq * max(tkv, 128)                             # live score/p tiles
        return blocks + scratch + temps

    for tq in tq_cands:
        for tkv in tkv_cands:
            if footprint(tq, tkv) <= budget:
                return tq, tkv
    return tq_cands[-1], tkv_cands[-1]


def multi_head_attention(Q, KV, *, num_heads):
    """Q: (B, N, C), KV: (B, NK, 2C) -> (B, N, C), heads concatenated on C."""
    B, N, C = Q.shape
    NK = KV.shape[1]
    hd = C // num_heads
    itemsize = jnp.dtype(Q.dtype).itemsize

    tq, tkv = _pick_attn_tiles(N, NK, C, num_heads, hd, itemsize,
                               budget=int(_vmem_limit_bytes() * 0.4))
    grid = (B, N // tq, NK // tkv)

    cost = pl.CostEstimate(
        flops=4 * B * N * NK * C,                                   # QK^T + PV, all heads
        transcendentals=B * num_heads * N * (NK + NK // tkv),
        bytes_accessed=itemsize * (B * N * C * (NK // tkv) + B * NK * 2 * C + B * N * C),
    )
    kernel = functools.partial(_flash_attn_kernel, num_heads=num_heads, head_dim=hd)

    return pl.pallas_call(
        kernel,
        out_shape=jax.ShapeDtypeStruct((B, N, C), Q.dtype),
        grid_spec=pltpu.PrefetchScalarGridSpec(
            num_scalar_prefetch=0,
            grid=grid,
            in_specs=[
                pl.BlockSpec((1, tq, C), lambda b, qi, ki: (b, qi, 0)),
                pl.BlockSpec((1, tkv, 2 * C), lambda b, qi, ki: (b, ki, 0)),
            ],
            out_specs=pl.BlockSpec((1, tq, C), lambda b, qi, ki: (b, qi, 0)),
            scratch_shapes=[
                pltpu.VMEM((num_heads, tq, 1), jnp.float32),    # running max m
                pltpu.VMEM((num_heads, tq, 1), jnp.float32),    # running denom l
                pltpu.VMEM((num_heads, tq, hd), jnp.float32),   # running PV accumulator
            ],
        ),
        compiler_params=pltpu.CompilerParams(
            dimension_semantics=("parallel", "parallel", "arbitrary"),
            vmem_limit_bytes=_vmem_limit_bytes(),
        ),
        cost_estimate=cost,
    )(Q, KV)


# -----------------------------------------------------------------------------
# CrossAttention forward
# -----------------------------------------------------------------------------
def cross_attention(params, q, v, *, num_heads, qk_scale=None):
    B, N, dim = q.shape
    NK = v.shape[1]
    C = params["wq"].shape[1]                       # out_dim
    hd = C // num_heads
    scale = qk_scale if qk_scale is not None else hd ** (-0.5)

    qf = q.reshape(B * N, dim)
    kvf = v.reshape(B * NK, dim)

    # q_map with the softmax scale folded into the matmul epilogue (free).
    Q = linear(qf, params["wq"], out_scale=scale).reshape(B, N, C)
    # Fused k_map/v_map: one pass over kvf, one kernel launch, output (B, NK, 2C).
    KV = linear(kvf, params["wkv"]).reshape(B, NK, 2 * C)

    # Flash attention consumes the projection layouts directly — no (B, H, N, hd)
    # transpose copies exist in HBM; output is a lane-dense (B, N, C) array.
    o = multi_head_attention(Q, KV, num_heads=num_heads)           # (B, N, C)

    # TODO(synk): for memory-bound shapes, fuse this projection into the attention
    # epilogue (resident wp tile) to skip one HBM round trip of o.
    x = linear(o.reshape(B * N, C), params["wp"], params["bp"])    # proj (+bias)
    # attn_drop / proj_drop are p=0.0 -> identity (eval semantics)
    return x.reshape(B, N, C)


def cross_attention_reference(params, q, v, *, num_heads, qk_scale=None):
    """Plain-JAX reference mirroring the PyTorch forward."""
    B, N, dim = q.shape
    NK = v.shape[1]
    C = params["wq"].shape[1]
    hd = C // num_heads
    scale = qk_scale if qk_scale is not None else hd ** (-0.5)
    wk = params["wkv"][:, :C]
    wv = params["wkv"][:, C:]

    Q = (q @ params["wq"]).reshape(B, N, num_heads, hd).transpose(0, 2, 1, 3)
    K = (v @ wk).reshape(B, NK, num_heads, hd).transpose(0, 2, 1, 3)
    V = (v @ wv).reshape(B, NK, num_heads, hd).transpose(0, 2, 1, 3)
    attn = jnp.einsum("bhnd,bhkd->bhnk", Q, K) * scale
    attn = jax.nn.softmax(attn, axis=-1)
    x = jnp.einsum("bhnk,bhkd->bhnd", attn, V).transpose(0, 2, 1, 3).reshape(B, N, C)
    return x @ params["wp"] + params["bp"]


def init_params(key, dim, out_dim):
    k1, k2, k3, k4, k5 = jax.random.split(key, 5)
    s = 0.02
    wk = s * jax.random.normal(k2, (dim, out_dim), jnp.float32)
    wv = s * jax.random.normal(k3, (dim, out_dim), jnp.float32)
    return {
        "wq": s * jax.random.normal(k1, (dim, out_dim), jnp.float32),
        "wkv": jnp.concatenate([wk, wv], axis=1),   # fused k_map / v_map weight
        "wp": s * jax.random.normal(k4, (out_dim, out_dim), jnp.float32),
        "bp": s * jax.random.normal(k5, (1, out_dim), jnp.float32),
    }


if __name__ == "__main__":
    B, N, NK = 2, 8, 16
    dim, out_dim, num_heads = 32, 64, 8

    key = jax.random.PRNGKey(0)
    kq, kv, kp = jax.random.split(key, 3)
    q = jax.random.normal(kq, (B, N, dim), jnp.float32)
    v = jax.random.normal(kv, (B, NK, dim), jnp.float32)
    params = init_params(kp, dim, out_dim)

    out = cross_attention(params, q, v, num_heads=num_heads)
    out = jax.block_until_ready(out)

    ref = cross_attention_reference(params, q, v, num_heads=num_heads)
    assert out.shape == (B, N, out_dim)
    # exact softmax denominator (post-PV exact reciprocal) -> tight tolerance
    assert jnp.allclose(out, ref, rtol=1e-3, atol=1e-4), "mismatch vs reference"

    print("KERNEL_OK")
</pallas_src>

<mosaic_0001>
module attributes {stable_mosaic.version = 11 : i64} {
  func.func @_matmul_kernel(%arg0: i32, %arg1: i32, %arg2: i32, %arg3: memref<16x32xf32, #tpu.memory_space<vmem>>, %arg4: memref<32x64xf32, #tpu.memory_space<vmem>>, %arg5: memref<16x64xf32, #tpu.memory_space<vmem>>, %arg6: memref<16x64xf32, #tpu.memory_space<vmem>>) attributes {dimension_semantics = [#tpu.dimension_semantics<parallel>, #tpu.dimension_semantics<parallel>, #tpu.dimension_semantics<arbitrary>], iteration_bounds = array<i64: 1, 1, 1>, scalar_prefetch = 0 : i64, scratch_operands = 1 : i64, tpu.core_type = #tpu.core_type<tc>, window_params = [{transform_indices = @transform_0, window_bounds = array<i64: 16, 32>}, {transform_indices = @transform_1, window_bounds = array<i64: 32, 64>}, {transform_indices = @transform_2, window_bounds = array<i64: 16, 64>}]} {
    %c0_i32 = arith.constant 0 : i32
    %0 = arith.cmpi eq, %arg2, %c0_i32 : i32
    %1 = arith.extui %0 : i1 to i32
    %c0_i32_0 = arith.constant 0 : i32
    %2 = arith.cmpi ne, %1, %c0_i32_0 : i32
    scf.if %2 {
      %cst_10 = arith.constant 0.000000e+00 : f32
      %12 = vector.broadcast %cst_10 : f32 to vector<16x64xf32>
      %c0_11 = arith.constant 0 : index
      %c0_12 = arith.constant 0 : index
      %13 = vector.load %arg6[%c0_11, %c0_12] : memref<16x64xf32, #tpu.memory_space<vmem>>, vector<16x64xf32>
      tpu.vector_store %arg6[%c0_11, %c0_12], %12 {strides = array<i32>} : memref<16x64xf32, #tpu.memory_space<vmem>>, vector<16x64xf32>,
    } else {
    }
    %c0 = arith.constant 0 : index
    %c0_1 = arith.constant 0 : index
    %3 = vector.load %arg6[%c0, %c0_1] : memref<16x64xf32, #tpu.memory_space<vmem>>, vector<16x64xf32>
    %c0_2 = arith.constant 0 : index
    %c0_3 = arith.constant 0 : index
    %4 = vector.load %arg3[%c0_2, %c0_3] : memref<16x32xf32, #tpu.memory_space<vmem>>, vector<16x32xf32>
    %c0_4 = arith.constant 0 : index
    %c0_5 = arith.constant 0 : index
    %5 = vector.load %arg4[%c0_4, %c0_5] : memref<32x64xf32, #tpu.memory_space<vmem>>, vector<32x64xf32>
    %cst = arith.constant dense<0.000000e+00> : vector<16x64xf32>
    %6 = tpu.matmul %4, %5, %cst {dimension_numbers = #tpu.dot_dimension_numbers<[1], [0], [0], [1], [0, 0, 1, 1], [], []>} : vector<16x32xf32>, vector<32x64xf32>, vector<16x64xf32> -> vector<16x64xf32>
    %7 = arith.addf %3, %6 : vector<16x64xf32>
    %c0_6 = arith.constant 0 : index
    %c0_7 = arith.constant 0 : index
    %8 = vector.load %arg6[%c0_6, %c0_7] : memref<16x64xf32, #tpu.memory_space<vmem>>, vector<16x64xf32>
    tpu.vector_store %arg6[%c0_6, %c0_7], %7 {strides = array<i32>} : memref<16x64xf32, #tpu.memory_space<vmem>>, vector<16x64xf32>,
    %c0_i32_8 = arith.constant 0 : i32
    %9 = arith.cmpi eq, %arg2, %c0_i32_8 : i32
    %10 = arith.extui %9 : i1 to i32
    %c0_i32_9 = arith.constant 0 : i32
    %11 = arith.cmpi ne, %10, %c0_i32_9 : i32
    scf.if %11 {
      %c0_10 = arith.constant 0 : index
      %c0_11 = arith.constant 0 : index
      %12 = vector.load %arg6[%c0_10, %c0_11] : memref<16x64xf32, #tpu.memory_space<vmem>>, vector<16x64xf32>
      %cst_12 = arith.constant 0.353553385 : f32
      %13 = vector.broadcast %cst_12 : f32 to vector<16x64xf32>
      %14 = arith.mulf %12, %13 : vector<16x64xf32>
      %c0_13 = arith.constant 0 : index
      %c0_14 = arith.constant 0 : index
      %15 = vector.load %arg5[%c0_13, %c0_14] : memref<16x64xf32, #tpu.memory_space<vmem>>, vector<16x64xf32>
      tpu.vector_store %arg5[%c0_13, %c0_14], %14 {strides = array<i32>} : memref<16x64xf32, #tpu.memory_space<vmem>>, vector<16x64xf32>,
    } else {
    }
    return
  }
  func.func @transform_0(%arg0: i32, %arg1: i32, %arg2: i32) -> (i32, i32) {
    %c0_i32 = arith.constant 0 : i32
    return %arg0, %arg2 : i32, i32
  }
  func.func @transform_1(%arg0: i32, %arg1: i32, %arg2: i32) -> (i32, i32) {
    %c0_i32 = arith.constant 0 : i32
    return %arg2, %arg1 : i32, i32
  }
  func.func @transform_2(%arg0: i32, %arg1: i32, %arg2: i32) -> (i32, i32) {
    %c0_i32 = arith.constant 0 : i32
    return %arg0, %arg1 : i32, i32
  }
}

</mosaic_0001>

<llo_original>
// kernel: tpu_custom_call.1
$region0: #{tpu_custom_call.1}
  #allocation0 [shape = 'u32[]', space=smem, size = 0x4, offset = 0x4, fixed_abs, tag = 'smem constant byte address 0x4 - core index']
  #allocation1 [shape = 'u32[144,128]{1,0:T(1,128)}', space=vmem, size = 0x12000, scoped, tag = 'internal scratch']
  #allocation2 [shape = 'f32[16,64]{1,0:T(8,128)}', space=vmem, size = 0x2000, scoped, tag = 'scratch operand']
  %s0 = inlined_call_operand.hbm [shape: f32[16,32], index: 0, kind: input, shape index: {}]
  %s1 = inlined_call_operand.hbm [shape: f32[32,64], index: 1, kind: input, shape index: {}]
  %s2 = inlined_call_operand.hbm [shape: f32[16,64], index: 2, kind: output, shape index: {}]
  %s3 = sld [smem:[#allocation0]]
  $region34: #{tpu_custom_call.1} parent=0
    _
  %s5 = ssub.s32 1, %s3
  %s6 = scalar_select 0, %s5, %s3
  $region1: #{tpu_custom_call.1} parent=0
    #allocation3 [shape = 'u8[8192]{0}', space=vmem, size = 0x2000, scoped, tag = 'input window, operand 0, single buffered']
    #allocation4 [shape = 's32[1]{0}', space=sflag, size = 0x4, scoped, tag = 'scoped memory for tpu_custom_call.1']
    #allocation5 [shape = 's32[1]{0}', space=sflag, size = 0x4, scoped, tag = 'scoped memory for tpu_custom_call.1']
    #allocation6 [shape = 'u8[16384]{0}', space=vmem, size = 0x4000, scoped, tag = 'input window, operand 1, single buffered']
    #allocation7 [shape = 's32[1]{0}', space=sflag, size = 0x4, scoped, tag = 'scoped memory for tpu_custom_call.1']
    #allocation8 [shape = 'u8[8192]{0}', space=vmem, size = 0x2000, scoped, tag = 'output window, operand 0, single buffered']
    %7 = vsyncpa [#allocation4], 0
    %8 = vsyncpa [#allocation7], 0
    %9 = vsyncpa [#allocation5], 0
    // Predicated region
    $region2: #{tpu_custom_call.1} parent=1 // pred_check
      _
    $region3: #{tpu_custom_call.1} parent=1 // pred_check_branch
      %11 = sbr.rel (0) target = $region5
    $region4: #{tpu_custom_call.1} parent=1 // pred_region
      %s13 = ssub.s32 256, 256
      %14 = vsyncadd [#allocation4], %s13
      %s15 = sshll.u32 [#allocation3], 4
      %s16 = int_to_ptr.vmem [resolvable:$true] %s15
      %21 = dma.hbm_to_vmem [thread:$0]  %s0, 256, %s16, [#allocation4], 128, 128, 8
    $region5: #{tpu_custom_call.1} parent=1 // pred_fallthru
      _
    // Predicated region
    $region6: #{tpu_custom_call.1} parent=1 // pred_check
      _
    $region7: #{tpu_custom_call.1} parent=1 // pred_check_branch
      %23 = sbr.rel (0) target = $region9
    $region8: #{tpu_custom_call.1} parent=1 // pred_region
      %s25 = ssub.s32 512, 512
      %26 = vsyncadd [#allocation7], %s25
      %s27 = sshll.u32 [#allocation6], 4
      %s28 = int_to_ptr.vmem [resolvable:$true] %s27
      %33 = dma.hbm_to_vmem [thread:$0]  %s1, 512, %s28, [#allocation7], 128, 128, 8
    $region9: #{tpu_custom_call.1} parent=1 // pred_fallthru
      _
    // Predicated region
    $region10: #{tpu_custom_call.1} parent=1 // pred_check
      _
    $region11: #{tpu_custom_call.1} parent=1 // pred_check_branch
      %35 = sbr.rel (0) target = $region13
    $region12: #{tpu_custom_call.1} parent=1 // pred_region
      %36 = dma.done [#allocation4], 256
    $region13: #{tpu_custom_call.1} parent=1 // pred_fallthru
      _
    // Predicated region
    $region14: #{tpu_custom_call.1} parent=1 // pred_check
      _
    $region15: #{tpu_custom_call.1} parent=1 // pred_check_branch
      %38 = sbr.rel (0) target = $region17
    $region16: #{tpu_custom_call.1} parent=1 // pred_region
      %39 = dma.done [#allocation7], 512
    $region17: #{tpu_custom_call.1} parent=1 // pred_fallthru
      _
    %p40 = scmp.eq.s32.totalorder 0, 0
    // Predicated region
    $region18: #{tpu_custom_call.1} parent=1 // pred_check
      %p41 = pneg %p40
    $region19: #{tpu_custom_call.1} parent=1 // pred_check_branch
      %43 = sbr.rel (%p41) target = $region21
    $region20: #{tpu_custom_call.1} parent=1 // pred_region
      %vm44 = vcmask 523264
      %45 = vst.msk [vmem:[#allocation2] sm:$0xff] %vm44, 0.0
      %46 = vst.msk [vmem:[#allocation2 + $0x8] sm:$0xff] %vm44, 0.0
    $region21: #{tpu_custom_call.1} parent=1 // pred_fallthru
      _
    %v47 = vld [vmem:[#allocation2] sm:$0xff]
    %v48 = vld [vmem:[#allocation2 + $0x8] sm:$0xff]
    %v49 = vld [vmem:[#allocation3] sm:$0xff]
    %v50 = vld [vmem:[#allocation3 + $0x8] sm:$0xff]
    %v51 = vld [vmem:[#allocation6] sm:$0xff]
    %v52 = vld [vmem:[#allocation6 + $0x8] sm:$0xff]
    %v53 = vld [vmem:[#allocation6 + $0x10] sm:$0xff]
    %v54 = vld [vmem:[#allocation6 + $0x18] sm:$0xff]
    %vm55 = vcmask 261120
    %v57 = vsel %vm55, %v49, 0
    %v60 = vsel %vm55, %v50, 0
    %62 = vmatprep.subr.mxu0 0.0
    %63 = vmatpush1.msra.mxu0 0.0
    %64 = vmatprep.subr.mxu0 0.0
    %65 = vmatpush1.msra.mxu0 0.0
    %66 = vmatprep.subr.mxu0 0.0
    %67 = vmatpush1.msra.mxu0 0.0
    %68 = vmatprep.subr.mxu0 0.0
    %69 = vmatpush1.msra.mxu0 0.0
    %70 = vmatprep.subr.mxu0 0.0
    %71 = vmatpush1.msra.mxu0 0.0
    %72 = vmatprep.subr.mxu0 0.0
    %73 = vmatpush1.msra.mxu0 0.0
    %74 = vmatprep.subr.mxu0 0.0
    %75 = vmatpush1.msra.mxu0 0.0
    %76 = vmatprep.subr.mxu0 0.0
    %77 = vmatpush1.msra.mxu0 0.0
    %78 = vmatprep.subr.mxu0 0.0
    %79 = vmatpush1.msra.mxu0 0.0
    %80 = vmatprep.subr.mxu0 0.0
    %81 = vmatpush1.msra.mxu0 0.0
    %82 = vmatprep.subr.mxu0 0.0
    %83 = vmatpush1.msra.mxu0 0.0
    %84 = vmatprep.subr.mxu0 0.0
    %85 = vmatpush1.msra.mxu0 0.0
    %86 = vmatprep.subr.mxu0 0.0
    %87 = vmatpush1.msra.mxu0 %v54
    %88 = vmatprep.subr.mxu0 0.0
    %89 = vmatpush1.msra.mxu0 %v53
    %90 = vmatprep.subr.mxu0 0.0
    %91 = vmatpush1.msra.mxu0 %v52
    %92 = vmatprep.subr.mxu0 0.0
    %93 = vmatpush1.msra.mxu0 %v51
    %94 = vmatprep.subr.mxu0 0.0
    %95 = vmatpush2.msra.mxu0 0.0
    %96 = vmatprep.subr.mxu0 0.0
    %97 = vmatpush2.msra.mxu0 0.0
    %98 = vmatprep.subr.mxu0 0.0
    %99 = vmatpush2.msra.mxu0 0.0
    %100 = vmatprep.subr.mxu0 0.0
    %101 = vmatpush2.msra.mxu0 0.0
    %102 = vmatprep.subr.mxu0 0.0
    %103 = vmatpush2.msra.mxu0 0.0
    %104 = vmatprep.subr.mxu0 0.0
    %105 = vmatpush2.msra.mxu0 0.0
    %106 = vmatprep.subr.mxu0 0.0
    %107 = vmatpush2.msra.mxu0 0.0
    %108 = vmatprep.subr.mxu0 0.0
    %109 = vmatpush2.msra.mxu0 0.0
    %110 = vmatprep.subr.mxu0 0.0
    %111 = vmatpush2.msra.mxu0 0.0
    %112 = vmatprep.subr.mxu0 0.0
    %113 = vmatpush2.msra.mxu0 0.0
    %114 = vmatprep.subr.mxu0 0.0
    %115 = vmatpush2.msra.mxu0 0.0
    %116 = vmatprep.subr.mxu0 0.0
    %117 = vmatpush2.msra.mxu0 0.0
    %118 = vmatprep.subr.mxu0 0.0
    %119 = vmatpush2.msra.mxu0 0.0
    %120 = vmatprep.subr.mxu0 0.0
    %121 = vmatpush2.msra.mxu0 0.0
    %122 = vmatprep.subr.mxu0 0.0
    %123 = vmatpush2.msra.mxu0 0.0
    %124 = vmatprep.subr.mxu0 0.0
    %125 = vmatpush2.msra.mxu0 0.0
    %126 = vmatprep.mubr.f32.mxu0 0.0
    %127 = vmatmul.mubr.f32.gmra.mxu0 %v57
    %v128 = vpop.f32.mrf.mxu0
    %v129 = vadd.f32 0.0, %v128
    %v130 = vpop.f32.mrf.mxu0
    %131 = vmatprep.mubr.f32.mxu0 0.0
    %132 = vmatmul.mubr.f32.gmra.mxu0 %v60
    %v133 = vpop.f32.mrf.mxu0
    %v134 = vadd.f32 0.0, %v133
    %v135 = vpop.f32.mrf.mxu0
    %136 = vdwg.mxu0
    %v137 = vadd.f32 %v47, %v129
    %v138 = vadd.f32 %v48, %v134
    %vm139 = vcmask 523264
    %140 = vst.msk [vmem:[#allocation2] sm:$0xff] %vm139, %v137
    %141 = vst.msk [vmem:[#allocation2 + $0x8] sm:$0xff] %vm139, %v138
    // Predicated region
    $region22: #{tpu_custom_call.1} parent=1 // pred_check
      %p142 = pneg %p40
    $region23: #{tpu_custom_call.1} parent=1 // pred_check_branch
      %144 = sbr.rel (%p142) target = $region25
    $region24: #{tpu_custom_call.1} parent=1 // pred_region
      %v145 = vld [vmem:[#allocation2] sm:$0xff]
      %v146 = vld [vmem:[#allocation2 + $0x8] sm:$0xff]
      %v147 = vmul.f32 %v145, 0.35355338
      %v148 = vmul.f32 %v146, 0.35355338
      %149 = vst.msk [vmem:[#allocation8] sm:$0xff] %vm139, %v147
      %150 = vst.msk [vmem:[#allocation8 + $0x8] sm:$0xff] %vm139, %v148
    $region25: #{tpu_custom_call.1} parent=1 // pred_fallthru
      _
    // Predicated region
    $region26: #{tpu_custom_call.1} parent=1 // pred_check
      _
    $region27: #{tpu_custom_call.1} parent=1 // pred_check_branch
      %152 = sbr.rel (0) target = $region29
    $region28: #{tpu_custom_call.1} parent=1 // pred_region
      %s154 = ssub.s32 256, 256
      %155 = vsyncadd [#allocation5], %s154
      %s156 = sshll.u32 [#allocation8], 4
      %s157 = int_to_ptr.vmem [resolvable:$true] %s156
      %162 = dma.vmem_to_hbm [thread:$0]  %s157, 256, %s2, [#allocation5], 128, 128, 8
    $region29: #{tpu_custom_call.1} parent=1 // pred_fallthru
      _
    // Predicated region
    $region30: #{tpu_custom_call.1} parent=1 // pred_check
      _
    $region31: #{tpu_custom_call.1} parent=1 // pred_check_branch
      %164 = sbr.rel (0) target = $region33
    $region32: #{tpu_custom_call.1} parent=1 // pred_region
      %165 = dma.done [#allocation5], 256
    $region33: #{tpu_custom_call.1} parent=1 // pred_fallthru
      _
    %166 = vsyncpa [#allocation4], 1
    %167 = vsyncpa [#allocation7], 1
    %168 = vsyncpa [#allocation5], 1

</llo_original>
